<compile_context>
chip_gen: v7x
topology: tpu7x:2x2x1
jax: 0.10.0
libtpu: 0.0.40
codegen_flags: <defaults>
</compile_context>

<pallas_src>
import jax
import jax.numpy as jnp
from jax.experimental import pallas as pl
from jax.experimental.pallas import tpu as pltpu


def _round_up(v, m):
    return ((v + m - 1) // m) * m


def _cdiv(a, b):
    return (a + b - 1) // b


def _sublane_multiple(dtype):
    # f32 -> 8, bf16 -> 16, int8/fp8 -> 32 (sublane packing of sub-32-bit dtypes).
    return max(8, 32 // jnp.dtype(dtype).itemsize)


def _vmem_budget_bytes():
    """Generation-aware scoped-VMEM budget for this kernel."""
    try:
        cap = int(pltpu.get_tpu_info().vmem_capacity_bytes)
    except Exception:  # off-TPU / older API -> conservative default
        cap = 64 * 1024 * 1024
    # ~half of physical VMEM, capped: ~48 MiB on v5e/v6e (128 MiB physical),
    # ~32 MiB on v7x (64 MiB per TensorCore).  Leaves headroom for compiler
    # scratch and intermediates.
    return int(min(48 * 1024 * 1024, max(16 * 1024 * 1024, cap // 2)))


def _largest_aligned_divisor(hw, cap):
    """Largest multiple of 128 that divides hw (requires hw % 128 == 0) and is <= cap."""
    k = hw // 128
    best = 128
    for d in range(1, k + 1):
        if k % d == 0 and 128 * d <= cap:
            best = 128 * d
    return best


def _pick_t_hw(hw, cap):
    """Pick the H*W tile width (lane axis) given a max-columns budget `cap`."""
    cap = max(int(cap), 128)
    if hw <= cap:
        return hw                                   # single full-extent tile (always legal)
    if hw % 128 == 0:
        return _largest_aligned_divisor(hw, cap)    # exact divisor -> no pad, no masking
    return (cap // 128) * 128                       # cdiv grid; only last tile is masked


def cam_use_kernel(att_ref, x_ref, o_ref):
    # att_ref: VMEM (1, C, C)     effective attention = gamma*A + I (residual folded in)
    # x_ref:   VMEM (1, C, T_HW)  lane-dense tile of the flattened feature map
    # o_ref:   VMEM (1, C, T_HW)
    out = jnp.dot(att_ref[0], x_ref[0], preferred_element_type=jnp.float32)
    o_ref[0] = out.astype(o_ref.dtype)


def cam_use(x, attention, gamma, *, vmem_budget_bytes=None):
    """x: (B, C, H, W), attention: (B, C, C), gamma: (1,) -- matches nn.Parameter(zeros(1))."""
    B, C, H, W = x.shape
    HW = H * W

    if vmem_budget_bytes is None:
        vmem_budget_bytes = _vmem_budget_bytes()

    # Fold gamma and the residual into the tiny (C, C) operand; keep it in f32 so
    # gamma*A is applied at full precision before the f32-accumulated matmul.
    eye = jnp.eye(C, dtype=jnp.float32)
    g = jnp.asarray(gamma, jnp.float32).reshape(())
    att_eff = g * attention.astype(jnp.float32) + eye[None]

    # ---- VMEM accounting (sublane-padded, attention + f32 accumulator included) ----
    x_item = jnp.dtype(x.dtype).itemsize
    att_item = jnp.dtype(att_eff.dtype).itemsize
    c_sub_x = _round_up(C, _sublane_multiple(x.dtype))
    c_sub_att = _round_up(C, _sublane_multiple(att_eff.dtype))
    c_lane_att = _round_up(C, 128)
    att_bytes = c_sub_att * c_lane_att * att_item
    # per H*W column: double-buffered x tile + double-buffered out tile + f32 accumulator
    per_col = 2 * c_sub_x * x_item + 2 * c_sub_x * x_item + c_sub_x * 4
    # budget attention conservatively at 2 buffers (covers the non-Buffered(1) fallback)
    col_budget = max(vmem_budget_bytes - 2 * att_bytes, 128 * per_col) // per_col

    t_hw = _pick_t_hw(HW, col_budget)
    # Ensure >= 2 grid steps so both v7x TensorCores get work on small-batch inputs.
    if B * _cdiv(HW, t_hw) < 2 and HW > 128:
        t_hw = _pick_t_hw(HW, max(128, HW // 2))

    n_tiles = _cdiv(HW, t_hw)
    grid = (B, n_tiles)

    xv = x.reshape(B, C, HW)   # contiguous view -> free, no extra HBM traffic

    cost = pl.CostEstimate(
        flops=2 * B * C * C * HW,
        bytes_accessed=x_item * (2 * B * C * HW) + att_item * (B * C * C),
        transcendentals=0,
    )
    compiler_params = pltpu.CompilerParams(
        dimension_semantics=("parallel", "parallel"),
        vmem_limit_bytes=int(vmem_budget_bytes),
    )

    x_spec = pl.BlockSpec((1, C, t_hw), lambda b, h: (b, 0, h))
    out_spec = pl.BlockSpec((1, C, t_hw), lambda b, h: (b, 0, h))

    def _call(att_spec):
        return pl.pallas_call(
            cam_use_kernel,
            out_shape=jax.ShapeDtypeStruct((B, C, HW), x.dtype),
            grid=grid,
            in_specs=[att_spec, x_spec],
            out_specs=out_spec,
            compiler_params=compiler_params,
            cost_estimate=cost,
        )(att_eff, xv)

    # Attention's block index only changes with `b`: a second pipeline buffer is
    # pure VMEM waste, so request single buffering; fall back to the default
    # double-buffered spec if this JAX build rejects pipeline_mode / Buffered(1).
    try:
        att_spec = pl.BlockSpec((1, C, C), lambda b, h: (b, 0, 0),
                                pipeline_mode=pl.Buffered(1))
        out = _call(att_spec)
    except Exception:
        out = _call(pl.BlockSpec((1, C, C), lambda b, h: (b, 0, 0)))

    return out.reshape(B, C, H, W)


def cam_use_reference(x, attention, gamma):
    B, C, H, W = x.shape
    xv = x.reshape(B, C, H * W).astype(jnp.float32)
    out = jnp.einsum("bij,bjk->bik", attention.astype(jnp.float32), xv)
    out = gamma.reshape(()).astype(jnp.float32) * out + xv
    return out.reshape(B, C, H, W).astype(x.dtype)


if __name__ == "__main__":
    key = jax.random.PRNGKey(0)

    # (B, C, H, W) test shapes: the second exercises the small-batch tile-split path.
    shapes = [(2, 4, 16, 16), (1, 8, 16, 16)]
    for (B, C, H, W) in shapes:
        key, kx, ka = jax.random.split(key, 3)
        x = jax.random.normal(kx, (B, C, H, W), dtype=jnp.float32)
        att_logits = jax.random.normal(ka, (B, C, C), dtype=jnp.float32)
        attention = jax.nn.softmax(att_logits, axis=-1)

        # Parameter per __init__: gamma = zeros(1). Also exercise a nonzero value.
        for gamma in (jnp.zeros((1,), jnp.float32), jnp.array([0.5], jnp.float32)):
            out = cam_use(x, attention, gamma)
            out = jax.block_until_ready(out)
            ref = cam_use_reference(x, attention, gamma)
            assert out.shape == (B, C, H, W)
            assert jnp.allclose(out, ref, atol=1e-5, rtol=1e-5)

    print("KERNEL_OK")
</pallas_src>

<mosaic_0001>
module attributes {stable_mosaic.version = 11 : i64} {
  func.func @cam_use_kernel(%arg0: i32, %arg1: i32, %arg2: memref<1x4x4xf32, #tpu.memory_space<vmem>>, %arg3: memref<1x4x256xf32, #tpu.memory_space<vmem>>, %arg4: memref<1x4x256xf32, #tpu.memory_space<vmem>>) attributes {dimension_semantics = [#tpu.dimension_semantics<parallel>, #tpu.dimension_semantics<parallel>], iteration_bounds = array<i64: 2, 1>, scalar_prefetch = 0 : i64, scratch_operands = 0 : i64, tpu.core_type = #tpu.core_type<tc>, window_params = [{pipeline_mode = #tpu.pipeline_mode<synchronous>, transform_indices = @transform_0, window_bounds = array<i64: 1, 4, 4>}, {transform_indices = @transform_1, window_bounds = array<i64: 1, 4, 256>}, {transform_indices = @transform_2, window_bounds = array<i64: 1, 4, 256>}]} {
    %c0 = arith.constant 0 : index
    %c0_0 = arith.constant 0 : index
    %c0_1 = arith.constant 0 : index
    %0 = vector.load %arg2[%c0, %c0_0, %c0_1] : memref<1x4x4xf32, #tpu.memory_space<vmem>>, vector<1x4x4xf32>
    %1 = vector.shape_cast %0 : vector<1x4x4xf32> to vector<4x4xf32>
    %c0_2 = arith.constant 0 : index
    %c0_3 = arith.constant 0 : index
    %c0_4 = arith.constant 0 : index
    %2 = vector.load %arg3[%c0_2, %c0_3, %c0_4] : memref<1x4x256xf32, #tpu.memory_space<vmem>>, vector<1x4x256xf32>
    %3 = vector.shape_cast %2 : vector<1x4x256xf32> to vector<4x256xf32>
    %cst = arith.constant dense<0.000000e+00> : vector<4x256xf32>
    %4 = tpu.matmul %1, %3, %cst {dimension_numbers = #tpu.dot_dimension_numbers<[1], [0], [0], [1], [0, 0, 1, 1], [], []>} : vector<4x4xf32>, vector<4x256xf32>, vector<4x256xf32> -> vector<4x256xf32>
    %c0_5 = arith.constant 0 : index
    %c0_6 = arith.constant 0 : index
    %c0_7 = arith.constant 0 : index
    %5 = vector.load %arg4[%c0_5, %c0_6, %c0_7] : memref<1x4x256xf32, #tpu.memory_space<vmem>>, vector<1x4x256xf32>
    %6 = vector.shape_cast %5 : vector<1x4x256xf32> to vector<4x256xf32>
    %7 = vector.shape_cast %4 : vector<4x256xf32> to vector<1x4x256xf32>
    tpu.vector_store %arg4[%c0_5, %c0_6, %c0_7], %7 {strides = array<i32>} : memref<1x4x256xf32, #tpu.memory_space<vmem>>, vector<1x4x256xf32>,
    return
  }
  func.func @transform_0(%arg0: i32, %arg1: i32) -> (i32, i32, i32) {
    %c0_i32 = arith.constant 0 : i32
    %c0_i32_0 = arith.constant 0 : i32
    %c0_i32_1 = arith.constant 0 : i32
    return %arg0, %c0_i32, %c0_i32_0 : i32, i32, i32
  }
  func.func @transform_1(%arg0: i32, %arg1: i32) -> (i32, i32, i32) {
    %c0_i32 = arith.constant 0 : i32
    %c0_i32_0 = arith.constant 0 : i32
    return %arg0, %c0_i32, %arg1 : i32, i32, i32
  }
  func.func @transform_2(%arg0: i32, %arg1: i32) -> (i32, i32, i32) {
    %c0_i32 = arith.constant 0 : i32
    %c0_i32_0 = arith.constant 0 : i32
    return %arg0, %c0_i32, %arg1 : i32, i32, i32
  }
}

module attributes {stable_mosaic.version = 11 : i64} {
  func.func @cam_use_kernel(%arg0: i32, %arg1: i32, %arg2: memref<1x4x4xf32, #tpu.memory_space<vmem>>, %arg3: memref<1x4x256xf32, #tpu.memory_space<vmem>>, %arg4: memref<1x4x256xf32, #tpu.memory_space<vmem>>) attributes {dimension_semantics = [#tpu.dimension_semantics<parallel>, #tpu.dimension_semantics<parallel>], iteration_bounds = array<i64: 2, 1>, scalar_prefetch = 0 : i64, scratch_operands = 0 : i64, tpu.core_type = #tpu.core_type<tc>, window_params = [{transform_indices = @transform_0, window_bounds = array<i64: 1, 4, 4>}, {transform_indices = @transform_1, window_bounds = array<i64: 1, 4, 256>}, {transform_indices = @transform_2, window_bounds = array<i64: 1, 4, 256>}]} {
    %c0 = arith.constant 0 : index
    %c0_0 = arith.constant 0 : index
    %c0_1 = arith.constant 0 : index
    %0 = vector.load %arg2[%c0, %c0_0, %c0_1] : memref<1x4x4xf32, #tpu.memory_space<vmem>>, vector<1x4x4xf32>
    %1 = vector.shape_cast %0 : vector<1x4x4xf32> to vector<4x4xf32>
    %c0_2 = arith.constant 0 : index
    %c0_3 = arith.constant 0 : index
    %c0_4 = arith.constant 0 : index
    %2 = vector.load %arg3[%c0_2, %c0_3, %c0_4] : memref<1x4x256xf32, #tpu.memory_space<vmem>>, vector<1x4x256xf32>
    %3 = vector.shape_cast %2 : vector<1x4x256xf32> to vector<4x256xf32>
    %cst = arith.constant dense<0.000000e+00> : vector<4x256xf32>
    %4 = tpu.matmul %1, %3, %cst {dimension_numbers = #tpu.dot_dimension_numbers<[1], [0], [0], [1], [0, 0, 1, 1], [], []>} : vector<4x4xf32>, vector<4x256xf32>, vector<4x256xf32> -> vector<4x256xf32>
    %c0_5 = arith.constant 0 : index
    %c0_6 = arith.constant 0 : index
    %c0_7 = arith.constant 0 : index
    %5 = vector.load %arg4[%c0_5, %c0_6, %c0_7] : memref<1x4x256xf32, #tpu.memory_space<vmem>>, vector<1x4x256xf32>
    %6 = vector.shape_cast %5 : vector<1x4x256xf32> to vector<4x256xf32>
    %7 = vector.shape_cast %4 : vector<4x256xf32> to vector<1x4x256xf32>
    tpu.vector_store %arg4[%c0_5, %c0_6, %c0_7], %7 {strides = array<i32>} : memref<1x4x256xf32, #tpu.memory_space<vmem>>, vector<1x4x256xf32>,
    return
  }
  func.func @transform_0(%arg0: i32, %arg1: i32) -> (i32, i32, i32) {
    %c0_i32 = arith.constant 0 : i32
    %c0_i32_0 = arith.constant 0 : i32
    %c0_i32_1 = arith.constant 0 : i32
    return %arg0, %c0_i32, %c0_i32_0 : i32, i32, i32
  }
  func.func @transform_1(%arg0: i32, %arg1: i32) -> (i32, i32, i32) {
    %c0_i32 = arith.constant 0 : i32
    %c0_i32_0 = arith.constant 0 : i32
    return %arg0, %c0_i32, %arg1 : i32, i32, i32
  }
  func.func @transform_2(%arg0: i32, %arg1: i32) -> (i32, i32, i32) {
    %c0_i32 = arith.constant 0 : i32
    %c0_i32_0 = arith.constant 0 : i32
    return %arg0, %c0_i32, %arg1 : i32, i32, i32
  }
}

</mosaic_0001>

<llo_original>
// kernel: tpu_custom_call.1
$region0: #{tpu_custom_call.1}
  #allocation0 [shape = 'u32[]', space=smem, size = 0x4, offset = 0x4, fixed_abs, tag = 'smem constant byte address 0x4 - core index']
  #allocation1 [shape = 'u32[144,128]{1,0:T(1,128)}', space=vmem, size = 0x12000, scoped, tag = 'internal scratch']
  %s0 = inlined_call_operand.hbm [shape: f32[2,4,4], index: 0, kind: input, shape index: {}]
  %s1 = inlined_call_operand.hbm [shape: f32[2,4,256], index: 1, kind: input, shape index: {}]
  %s2 = inlined_call_operand.hbm [shape: f32[2,4,256], index: 2, kind: output, shape index: {}]
  %s3 = sld [smem:[#allocation0]]
  $region49: #{tpu_custom_call.1} parent=0
    _
  %s5 = ssub.s32 1, %s3
  %s6 = scalar_select 0, %s5, %s3
  $region1: #{tpu_custom_call.1} parent=0
    #allocation2 [shape = 'u8[2048]{0}', space=vmem, size = 0x800, scoped, tag = 'input window, operand 0, single buffered']
    #allocation3 [shape = 's32[2]{0}', space=sflag, size = 0x8, scoped, tag = 'scoped memory for tpu_custom_call.1']
    #allocation4 [shape = 's32[2]{0}', space=sflag, size = 0x8, scoped, tag = 'scoped memory for tpu_custom_call.1']
    #allocation5 [shape = 'u8[8192]{0}', space=vmem, size = 0x2000, scoped, tag = 'input window, operand 1']
    #allocation6 [shape = 's32[2]{0}', space=sflag, size = 0x8, scoped, tag = 'scoped memory for tpu_custom_call.1']
    #allocation7 [shape = 'u8[8192]{0}', space=vmem, size = 0x2000, scoped, tag = 'output window, operand 0']
    %7 = vsyncpa [#allocation3], 0
    %8 = vsyncpa [#allocation6], 0
    %s9 = scalar_lea.sflag [#allocation6], 1
    %10 = vsyncpa %s9, 0
    %11 = vsyncpa [#allocation4], 0
    %s12 = scalar_lea.sflag [#allocation4], 1
    %13 = vsyncpa %s12, 0
    loop: start=0, step=1, limit=4
    $region2: #{tpu_custom_call.1} parent=1 // loop_pre_header
      _
    $region3: #{tpu_custom_call.1} parent=1 // loop_header
      %s15 = sphi 0, %s19
      %p16 = scmp.ge.s32.totalorder %s15, 4
      %s22 = sphi 0, %s34
      %s23 = sphi 0, %s30
      %s24 = sphi 0, %s22
      %s25 = sphi 0, %s23
      %s26 = sphi 0, %s24
      %s27 = sphi 0, %s25
      %s37 = sphi 0, %s39
      %s40 = sphi 0, %s37
      %s41 = sphi 0, %s40
      %s57 = sphi 0, %s41
      %s65 = sphi 0, %s67
      %s68 = sphi 0, %s65
      %s69 = sphi 0, %s68
      %s85 = sphi 0, %s69
      %s93 = sphi 0, %s95
      %s96 = sphi 0, %s93
      %s97 = sphi 0, %s96
      %s113 = sphi 0, %s97
    $region4: #{tpu_custom_call.1} parent=1 // loop_header_branch
      %18 = sbr.rel (%p16) target = $region8
    $region5: #{tpu_custom_call.1} parent=1 // loop_body
      %s20 = ssub.s32 %s15, 1
      %s21 = ssub.s32 %s15, 2
      %s28 = sadd.s32 1, %s23
      %p29 = scmp.ge.s32.totalorder %s28, 1
      %s30 = scalar_select %p29, 0, %s28
      %s31 = sadd.s32 1, %s22
      %s32 = scalar_select %p29, %s31, %s22
      %p33 = scmp.ge.s32.totalorder %s32, 2
      %s34 = scalar_select %p33, 0, %s32
      %s35 = ssub.s32 %s22, %s34
      %p36 = scmp.eq.s32.totalorder %s35, 0
      %s38 = sadd.s32 %s37, 1
      %s39 = scalar_select %p36, %s37, %s38
      %p42 = pneg %p36
      %p43 = scmp.eq.s32.totalorder %s15, 1
      %p44 = por %p42, %p43
      %p45 = scmp.ne.s32.totalorder %s37, %s40
      %p46 = scmp.eq.s32.totalorder %s15, 0
      %p47 = por %p45, %p46
      %p48 = scmp.ne.s32.totalorder %s37, %s40
      %p49 = scmp.eq.s32.totalorder %s20, 1
      %p50 = por %p48, %p49
      %p51 = scmp.ne.s32.totalorder %s40, %s41
      %p52 = scmp.eq.s32.totalorder %s20, 0
      %p53 = por %p51, %p52
      %p54 = scmp.ne.s32.totalorder %s40, %s41
      %p55 = scmp.eq.s32.totalorder %s21, 1
      %p56 = por %p54, %p55
      %p58 = scmp.ne.s32.totalorder %s41, %s57
      %p59 = scmp.eq.s32.totalorder %s21, 0
      %p60 = por %p58, %p59
      %s61 = ssub.s32 %s22, %s34
      %s62 = ssub.s32 %s23, %s30
      %s63 = sor.u32 %s61, %s62
      %p64 = scmp.eq.s32.totalorder %s63, 0
      %s66 = sadd.s32 %s65, 1
      %s67 = scalar_select %p64, %s65, %s66
      %p70 = pneg %p64
      %p71 = scmp.eq.s32.totalorder %s15, 1
      %p72 = por %p70, %p71
      %p73 = scmp.ne.s32.totalorder %s65, %s68
      %p74 = scmp.eq.s32.totalorder %s15, 0
      %p75 = por %p73, %p74
      %p76 = scmp.ne.s32.totalorder %s65, %s68
      %p77 = scmp.eq.s32.totalorder %s20, 1
      %p78 = por %p76, %p77
      %p79 = scmp.ne.s32.totalorder %s68, %s69
      %p80 = scmp.eq.s32.totalorder %s20, 0
      %p81 = por %p79, %p80
      %p82 = scmp.ne.s32.totalorder %s68, %s69
      %p83 = scmp.eq.s32.totalorder %s21, 1
      %p84 = por %p82, %p83
      %p86 = scmp.ne.s32.totalorder %s69, %s85
      %p87 = scmp.eq.s32.totalorder %s21, 0
      %p88 = por %p86, %p87
      %s89 = ssub.s32 %s22, %s34
      %s90 = ssub.s32 %s23, %s30
      %s91 = sor.u32 %s89, %s90
      %p92 = scmp.eq.s32.totalorder %s91, 0
      %s94 = sadd.s32 %s93, 1
      %s95 = scalar_select %p92, %s93, %s94
      %p98 = pneg %p92
      %p99 = scmp.eq.s32.totalorder %s15, 1
      %p100 = por %p98, %p99
      %p101 = scmp.ne.s32.totalorder %s93, %s96
      %p102 = scmp.eq.s32.totalorder %s15, 0
      %p103 = por %p101, %p102
      %p104 = scmp.ne.s32.totalorder %s93, %s96
      %p105 = scmp.eq.s32.totalorder %s20, 1
      %p106 = por %p104, %p105
      %p107 = scmp.ne.s32.totalorder %s96, %s97
      %p108 = scmp.eq.s32.totalorder %s20, 0
      %p109 = por %p107, %p108
      %p110 = scmp.ne.s32.totalorder %s96, %s97
      %p111 = scmp.eq.s32.totalorder %s21, 1
      %p112 = por %p110, %p111
      %p114 = scmp.ne.s32.totalorder %s97, %s113
      %p115 = scmp.eq.s32.totalorder %s21, 0
      %p116 = por %p114, %p115
      %p117 = scmp.le.s32.totalorder 1, %s15
      %p118 = scmp.lt.s32.totalorder %s15, 3
      %p119 = pnand %p117, %p118
      %p120 = pneg %p119
      // Predicated region
      $region9: #{tpu_custom_call.1} parent=5 // pred_check
        _
      $region10: #{tpu_custom_call.1} parent=5 // pred_check_branch
        %122 = sbr.rel (%p119) target = $region12
      $region11: #{tpu_custom_call.1} parent=5 // pred_region
        %s123 = ssub.s32 %s15, 1
        // Predicated region
        $region13: #{tpu_custom_call.1} parent=11 // pred_check
          %p124 = pneg %p53
        $region14: #{tpu_custom_call.1} parent=11 // pred_check_branch
          %126 = sbr.rel (%p124) target = $region16
        $region15: #{tpu_custom_call.1} parent=11 // pred_region
          %s128 = ssub.s32 64, 64
          %129 = vsyncadd [#allocation3], %s128
          %s130 = smul.addr %s24, 64
          %s131 = scalar_lea.hbm %s0, %s130
          %s133 = sshll.u32 [#allocation2], 4
          %s134 = int_to_ptr.vmem [resolvable:$true] %s133
          %136 = dma.hbm_to_vmem [thread:$0]  %s131, 64, %s134, [#allocation3]
        $region16: #{tpu_custom_call.1} parent=11 // pred_fallthru
          _
      $region12: #{tpu_custom_call.1} parent=5 // pred_fallthru
        _
      %p137 = scmp.lt.s32.totalorder %s15, 2
      // Predicated region
      $region17: #{tpu_custom_call.1} parent=5 // pred_check
        %p138 = pneg %p137
      $region18: #{tpu_custom_call.1} parent=5 // pred_check_branch
        %140 = sbr.rel (%p138) target = $region20
      $region19: #{tpu_custom_call.1} parent=5 // pred_region
        // Predicated region
        $region21: #{tpu_custom_call.1} parent=19 // pred_check
          %p141 = pneg %p75
        $region22: #{tpu_custom_call.1} parent=19 // pred_check_branch
          %143 = sbr.rel (%p141) target = $region24
        $region23: #{tpu_custom_call.1} parent=19 // pred_region
          %s144 = sand.u32 %s65, 1
          %s145 = scalar_lea.sflag [#allocation6], %s144
          %s146 = sand.u32 %s65, 1
          %s147 = smul.addr %s146, 8
          %s148 = scalar_lea.vmem [#allocation5], %s147
          %s149 = smul.u32 2, %s23
          %s151 = ssub.s32 128, 128
          %152 = vsyncadd %s145, %s151
          %s153 = smul.addr %s22, 2
          %s154 = sadd.s32 %s149, %s153
          %s155 = smul.addr %s154, 64
          %s156 = scalar_lea.hbm %s1, %s155
          %s158 = sshll.u32 %s148, 4
          %s159 = int_to_ptr.vmem [resolvable:$true] %s158
          %161 = dma.hbm_to_vmem [thread:$0]  %s156, 128, %s159, %s145
        $region24: #{tpu_custom_call.1} parent=19 // pred_fallthru
          _
      $region20: #{tpu_custom_call.1} parent=5 // pred_fallthru
        _
      %p162 = scmp.le.s32.totalorder 1, %s15
      %p163 = scmp.lt.s32.totalorder %s15, 3
      %p164 = pnand %p162, %p163
      %p165 = pneg %p164
      // Predicated region
      $region25: #{tpu_custom_call.1} parent=5 // pred_check
        _
      $region26: #{tpu_custom_call.1} parent=5 // pred_check_branch
        %167 = sbr.rel (%p164) target = $region28
      $region27: #{tpu_custom_call.1} parent=5 // pred_region
        %s168 = ssub.s32 %s15, 1
        // Predicated region
        $region29: #{tpu_custom_call.1} parent=27 // pred_check
          %p169 = pneg %p53
        $region30: #{tpu_custom_call.1} parent=27 // pred_check_branch
          %171 = sbr.rel (%p169) target = $region32
        $region31: #{tpu_custom_call.1} parent=27 // pred_region
          %172 = dma.done [#allocation3], 64
        $region32: #{tpu_custom_call.1} parent=27 // pred_fallthru
          _
        %s173 = sand.u32 %s68, 1
        %s174 = scalar_lea.sflag [#allocation6], %s173
        %s175 = sand.u32 %s68, 1
        %s176 = smul.addr %s175, 8
        %s177 = scalar_lea.vmem [#allocation5], %s176
        // Predicated region
        $region33: #{tpu_custom_call.1} parent=27 // pred_check
          %p178 = pneg %p81
        $region34: #{tpu_custom_call.1} parent=27 // pred_check_branch
          %180 = sbr.rel (%p178) target = $region36
        $region35: #{tpu_custom_call.1} parent=27 // pred_region
          %181 = dma.done %s174, 128
        $region36: #{tpu_custom_call.1} parent=27 // pred_fallthru
          _
        %p182 = pneg %p53
        %p183 = pneg %p50
        %s184 = sand.u32 %s68, 1
        %s185 = scalar_lea.sflag [#allocation6], %s184
        %s186 = sand.u32 %s68, 1
        %s187 = smul.addr %s186, 8
        %s188 = scalar_lea.vmem [#allocation5], %s187
        %p189 = pneg %p81
        %p190 = pneg %p78
        %p191 = pneg %p109
        %p192 = pneg %p106
        %s193 = sand.u32 %s96, 1
        %s194 = scalar_lea.sflag [#allocation4], %s193
        %s195 = sand.u32 %s96, 1
        %s196 = smul.addr %s195, 8
        %s197 = scalar_lea.vmem [#allocation7], %s196
        %s198 = smul.u32 2, %s25
        %s199 = smul.u32 2, %s25
        %v200 = vld [vmem:[#allocation2] sm:$0xf]
        %v201 = vld [vmem:[%s177] sm:$0xff]
        %v203 = vcombine.high %v201, %v201
        %vm204 = vcmask 31744
        %v206 = vsel %vm204, %v200, 0
        %vm208 = vcmask 1043456
        %v209 = vsel %vm208, %v201, 0
        %v211 = vsel %vm208, %v203, 0
        %213 = vmatprep.subr.mxu0 %v211
        %214 = vmatpush1.msra.mxu0 %v209
        %215 = vmatprep.subr.mxu0 0.0
        %216 = vmatpush1.msra.mxu0 0.0
        %217 = vmatprep.subr.mxu0 0.0
        %218 = vmatpush1.msra.mxu0 0.0
        %219 = vmatprep.subr.mxu0 0.0
        %220 = vmatpush1.msra.mxu0 0.0
        %221 = vmatprep.subr.mxu0 0.0
        %222 = vmatpush1.msra.mxu0 0.0
        %223 = vmatprep.subr.mxu0 0.0
        %224 = vmatpush1.msra.mxu0 0.0
        %225 = vmatprep.subr.mxu0 0.0
        %226 = vmatpush1.msra.mxu0 0.0
        %227 = vmatprep.subr.mxu0 0.0
        %228 = vmatpush1.msra.mxu0 0.0
        %229 = vmatprep.subr.mxu0 0.0
        %230 = vmatpush1.msra.mxu0 0.0
        %231 = vmatprep.subr.mxu0 0.0
        %232 = vmatpush1.msra.mxu0 0.0
        %233 = vmatprep.subr.mxu0 0.0
        %234 = vmatpush1.msra.mxu0 0.0
        %235 = vmatprep.subr.mxu0 0.0
        %236 = vmatpush1.msra.mxu0 0.0
        %237 = vmatprep.subr.mxu0 0.0
        %238 = vmatpush1.msra.mxu0 0.0
        %239 = vmatprep.subr.mxu0 0.0
        %240 = vmatpush1.msra.mxu0 0.0
        %241 = vmatprep.subr.mxu0 0.0
        %242 = vmatpush1.msra.mxu0 0.0
        %243 = vmatprep.subr.mxu0 0.0
        %244 = vmatpush1.msra.mxu0 0.0
        %245 = vmatprep.subr.mxu0 0.0
        %246 = vmatpush1.msra.mxu0 0.0
        %247 = vmatprep.subr.mxu0 0.0
        %248 = vmatpush1.msra.mxu0 0.0
        %249 = vmatprep.subr.mxu0 0.0
        %250 = vmatpush1.msra.mxu0 0.0
        %251 = vmatprep.subr.mxu0 0.0
        %252 = vmatpush1.msra.mxu0 0.0
        %253 = vmatprep.subr.mxu0 0.0
        %254 = vmatpush1.msra.mxu0 0.0
        %255 = vmatprep.subr.mxu0 0.0
        %256 = vmatpush1.msra.mxu0 0.0
        %257 = vmatprep.subr.mxu0 0.0
        %258 = vmatpush1.msra.mxu0 0.0
        %259 = vmatprep.subr.mxu0 0.0
        %260 = vmatpush1.msra.mxu0 0.0
        %261 = vmatprep.subr.mxu0 0.0
        %262 = vmatpush1.msra.mxu0 0.0
        %263 = vmatprep.subr.mxu0 0.0
        %264 = vmatpush1.msra.mxu0 0.0
        %265 = vmatprep.subr.mxu0 0.0
        %266 = vmatpush1.msra.mxu0 0.0
        %267 = vmatprep.subr.mxu0 0.0
        %268 = vmatpush1.msra.mxu0 0.0
        %269 = vmatprep.subr.mxu0 0.0
        %270 = vmatpush1.msra.mxu0 0.0
        %271 = vmatprep.subr.mxu0 0.0
        %272 = vmatpush1.msra.mxu0 0.0
        %273 = vmatprep.subr.mxu0 0.0
        %274 = vmatpush1.msra.mxu0 0.0
        %275 = vmatprep.subr.mxu0 0.0
        %276 = vmatpush1.msra.mxu0 0.0
        %277 = vmatprep.mubr.f32.mxu0 0.0
        %278 = vmatmul.mubr.f32.gmra.mrb[0].mxu0 %v206
        %v279 = vpop.f32.mrb[0].mxu0
        %v280 = vadd.f32 0.0, %v279
        %v281 = vpop.f32.mrb[0].mxu0
        %v282 = vadd.f32 0.0, %v281
        %283 = vdwg.mxu0
        %v286 = vcombine.low %v280, %v282
        %288 = vst [vmem:[%s197] sm:$0xff] %v286
        %s289 = sand.u32 %s96, 1
        %s290 = scalar_lea.sflag [#allocation4], %s289
        %s291 = sand.u32 %s96, 1
        %s292 = smul.addr %s291, 8
        %s293 = scalar_lea.vmem [#allocation7], %s292
        // Predicated region
        $region37: #{tpu_custom_call.1} parent=27 // pred_check
          %p294 = pneg %p106
        $region38: #{tpu_custom_call.1} parent=27 // pred_check_branch
          %296 = sbr.rel (%p294) target = $region40
        $region39: #{tpu_custom_call.1} parent=27 // pred_region
          %s297 = smul.u32 2, %s25
          %s299 = ssub.s32 128, 128
          %300 = vsyncadd %s290, %s299
          %s301 = smul.addr %s24, 2
          %s302 = sadd.s32 %s297, %s301
          %s303 = smul.addr %s302, 64
          %s304 = scalar_lea.hbm %s2, %s303
          %s306 = sshll.u32 %s293, 4
          %s307 = int_to_ptr.vmem [resolvable:$true] %s306
          %309 = dma.vmem_to_hbm [thread:$0]  %s307, 128, %s304, %s290
        $region40: #{tpu_custom_call.1} parent=27 // pred_fallthru
          _
      $region28: #{tpu_custom_call.1} parent=5 // pred_fallthru
        _
      %p310 = scmp.le.s32.totalorder 2, %s15
      // Predicated region
      $region41: #{tpu_custom_call.1} parent=5 // pred_check
        %p311 = pneg %p310
      $region42: #{tpu_custom_call.1} parent=5 // pred_check_branch
        %313 = sbr.rel (%p311) target = $region44
      $region43: #{tpu_custom_call.1} parent=5 // pred_region
        %s314 = ssub.s32 %s15, 2
        // Predicated region
        $region45: #{tpu_custom_call.1} parent=43 // pred_check
          %p315 = pneg %p112
        $region46: #{tpu_custom_call.1} parent=43 // pred_check_branch
          %317 = sbr.rel (%p315) target = $region48
        $region47: #{tpu_custom_call.1} parent=43 // pred_region
          %s318 = sand.u32 %s97, 1
          %s319 = scalar_lea.sflag [#allocation4], %s318
          %s320 = sand.u32 %s97, 1
          %s321 = smul.addr %s320, 8
          %s322 = scalar_lea.vmem [#allocation7], %s321
          %323 = dma.done %s319, 128
        $region48: #{tpu_custom_call.1} parent=43 // pred_fallthru
          _
      $region44: #{tpu_custom_call.1} parent=5 // pred_fallthru
        _
    $region6: #{tpu_custom_call.1} parent=1 // loop_footer
      %s19 = sadd.s32 1, %s15
    $region7: #{tpu_custom_call.1} parent=1 // loop_footer_branch
      %14 = sbr.rel target = $region3
    $region8: #{tpu_custom_call.1} parent=1 // loop_exit
      _
    %324 = vsyncpa [#allocation3], 1
    %s325 = scalar_lea.sflag [#allocation3], 1
    %326 = vsyncpa %s325, 1
    %327 = vsyncpa [#allocation6], 1
    %s328 = scalar_lea.sflag [#allocation6], 1
    %329 = vsyncpa %s328, 1
    %330 = vsyncpa [#allocation4], 1
    %s331 = scalar_lea.sflag [#allocation4], 1
    %332 = vsyncpa %s331, 1

// kernel: tpu_custom_call.1
$region0: #{tpu_custom_call.1}
  #allocation0 [shape = 'u32[]', space=smem, size = 0x4, offset = 0x4, fixed_abs, tag = 'smem constant byte address 0x4 - core index']
  #allocation1 [shape = 'u32[144,128]{1,0:T(1,128)}', space=vmem, size = 0x12000, scoped, tag = 'internal scratch']
  %s0 = inlined_call_operand.hbm [shape: f32[2,4,4], index: 0, kind: input, shape index: {}]
  %s1 = inlined_call_operand.hbm [shape: f32[2,4,256], index: 1, kind: input, shape index: {}]
  %s2 = inlined_call_operand.hbm [shape: f32[2,4,256], index: 2, kind: output, shape index: {}]
  %s3 = sld [smem:[#allocation0]]
  $region49: #{tpu_custom_call.1} parent=0
    _
  %s5 = ssub.s32 1, %s3
  %s6 = scalar_select 0, %s5, %s3
  $region1: #{tpu_custom_call.1} parent=0
    #allocation2 [shape = 'u8[4096]{0}', space=vmem, size = 0x1000, scoped, tag = 'input window, operand 0']
    #allocation3 [shape = 's32[2]{0}', space=sflag, size = 0x8, scoped, tag = 'scoped memory for tpu_custom_call.1']
    #allocation4 [shape = 's32[2]{0}', space=sflag, size = 0x8, scoped, tag = 'scoped memory for tpu_custom_call.1']
    #allocation5 [shape = 'u8[8192]{0}', space=vmem, size = 0x2000, scoped, tag = 'input window, operand 1']
    #allocation6 [shape = 's32[2]{0}', space=sflag, size = 0x8, scoped, tag = 'scoped memory for tpu_custom_call.1']
    #allocation7 [shape = 'u8[8192]{0}', space=vmem, size = 0x2000, scoped, tag = 'output window, operand 0']
    %7 = vsyncpa [#allocation3], 0
    %s8 = scalar_lea.sflag [#allocation3], 1
    %9 = vsyncpa %s8, 0
    %10 = vsyncpa [#allocation6], 0
    %s11 = scalar_lea.sflag [#allocation6], 1
    %12 = vsyncpa %s11, 0
    %13 = vsyncpa [#allocation4], 0
    %s14 = scalar_lea.sflag [#allocation4], 1
    %15 = vsyncpa %s14, 0
    loop: start=0, step=1, limit=4
    $region2: #{tpu_custom_call.1} parent=1 // loop_pre_header
      _
    $region3: #{tpu_custom_call.1} parent=1 // loop_header
      %s17 = sphi 0, %s21
      %p18 = scmp.ge.s32.totalorder %s17, 4
      %s24 = sphi 0, %s36
      %s25 = sphi 0, %s32
      %s26 = sphi 0, %s24
      %s27 = sphi 0, %s25
      %s28 = sphi 0, %s26
      %s29 = sphi 0, %s27
      %s39 = sphi 0, %s41
      %s42 = sphi 0, %s39
      %s43 = sphi 0, %s42
      %s59 = sphi 0, %s43
      %s67 = sphi 0, %s69
      %s70 = sphi 0, %s67
      %s71 = sphi 0, %s70
      %s87 = sphi 0, %s71
      %s95 = sphi 0, %s97
      %s98 = sphi 0, %s95
      %s99 = sphi 0, %s98
      %s115 = sphi 0, %s99
    $region4: #{tpu_custom_call.1} parent=1 // loop_header_branch
      %20 = sbr.rel (%p18) target = $region8
    $region5: #{tpu_custom_call.1} parent=1 // loop_body
      %s22 = ssub.s32 %s17, 1
      %s23 = ssub.s32 %s17, 2
      %s30 = sadd.s32 1, %s25
      %p31 = scmp.ge.s32.totalorder %s30, 1
      %s32 = scalar_select %p31, 0, %s30
      %s33 = sadd.s32 1, %s24
      %s34 = scalar_select %p31, %s33, %s24
      %p35 = scmp.ge.s32.totalorder %s34, 2
      %s36 = scalar_select %p35, 0, %s34
      %s37 = ssub.s32 %s24, %s36
      %p38 = scmp.eq.s32.totalorder %s37, 0
      %s40 = sadd.s32 %s39, 1
      %s41 = scalar_select %p38, %s39, %s40
      %p44 = pneg %p38
      %p45 = scmp.eq.s32.totalorder %s17, 1
      %p46 = por %p44, %p45
      %p47 = scmp.ne.s32.totalorder %s39, %s42
      %p48 = scmp.eq.s32.totalorder %s17, 0
      %p49 = por %p47, %p48
      %p50 = scmp.ne.s32.totalorder %s39, %s42
      %p51 = scmp.eq.s32.totalorder %s22, 1
      %p52 = por %p50, %p51
      %p53 = scmp.ne.s32.totalorder %s42, %s43
      %p54 = scmp.eq.s32.totalorder %s22, 0
      %p55 = por %p53, %p54
      %p56 = scmp.ne.s32.totalorder %s42, %s43
      %p57 = scmp.eq.s32.totalorder %s23, 1
      %p58 = por %p56, %p57
      %p60 = scmp.ne.s32.totalorder %s43, %s59
      %p61 = scmp.eq.s32.totalorder %s23, 0
      %p62 = por %p60, %p61
      %s63 = ssub.s32 %s24, %s36
      %s64 = ssub.s32 %s25, %s32
      %s65 = sor.u32 %s63, %s64
      %p66 = scmp.eq.s32.totalorder %s65, 0
      %s68 = sadd.s32 %s67, 1
      %s69 = scalar_select %p66, %s67, %s68
      %p72 = pneg %p66
      %p73 = scmp.eq.s32.totalorder %s17, 1
      %p74 = por %p72, %p73
      %p75 = scmp.ne.s32.totalorder %s67, %s70
      %p76 = scmp.eq.s32.totalorder %s17, 0
      %p77 = por %p75, %p76
      %p78 = scmp.ne.s32.totalorder %s67, %s70
      %p79 = scmp.eq.s32.totalorder %s22, 1
      %p80 = por %p78, %p79
      %p81 = scmp.ne.s32.totalorder %s70, %s71
      %p82 = scmp.eq.s32.totalorder %s22, 0
      %p83 = por %p81, %p82
      %p84 = scmp.ne.s32.totalorder %s70, %s71
      %p85 = scmp.eq.s32.totalorder %s23, 1
      %p86 = por %p84, %p85
      %p88 = scmp.ne.s32.totalorder %s71, %s87
      %p89 = scmp.eq.s32.totalorder %s23, 0
      %p90 = por %p88, %p89
      %s91 = ssub.s32 %s24, %s36
      %s92 = ssub.s32 %s25, %s32
      %s93 = sor.u32 %s91, %s92
      %p94 = scmp.eq.s32.totalorder %s93, 0
      %s96 = sadd.s32 %s95, 1
      %s97 = scalar_select %p94, %s95, %s96
      %p100 = pneg %p94
      %p101 = scmp.eq.s32.totalorder %s17, 1
      %p102 = por %p100, %p101
      %p103 = scmp.ne.s32.totalorder %s95, %s98
      %p104 = scmp.eq.s32.totalorder %s17, 0
      %p105 = por %p103, %p104
      %p106 = scmp.ne.s32.totalorder %s95, %s98
      %p107 = scmp.eq.s32.totalorder %s22, 1
      %p108 = por %p106, %p107
      %p109 = scmp.ne.s32.totalorder %s98, %s99
      %p110 = scmp.eq.s32.totalorder %s22, 0
      %p111 = por %p109, %p110
      %p112 = scmp.ne.s32.totalorder %s98, %s99
      %p113 = scmp.eq.s32.totalorder %s23, 1
      %p114 = por %p112, %p113
      %p116 = scmp.ne.s32.totalorder %s99, %s115
      %p117 = scmp.eq.s32.totalorder %s23, 0
      %p118 = por %p116, %p117
      %p119 = scmp.le.s32.totalorder 1, %s17
      %p120 = scmp.lt.s32.totalorder %s17, 3
      %p121 = pnand %p119, %p120
      %p122 = pneg %p121
      // Predicated region
      $region9: #{tpu_custom_call.1} parent=5 // pred_check
        _
      $region10: #{tpu_custom_call.1} parent=5 // pred_check_branch
        %124 = sbr.rel (%p121) target = $region12
      $region11: #{tpu_custom_call.1} parent=5 // pred_region
        %s125 = ssub.s32 %s17, 1
      $region12: #{tpu_custom_call.1} parent=5 // pred_fallthru
        _
      %p126 = scmp.lt.s32.totalorder %s17, 2
      // Predicated region
      $region13: #{tpu_custom_call.1} parent=5 // pred_check
        %p127 = pneg %p126
      $region14: #{tpu_custom_call.1} parent=5 // pred_check_branch
        %129 = sbr.rel (%p127) target = $region16
      $region15: #{tpu_custom_call.1} parent=5 // pred_region
        // Predicated region
        $region17: #{tpu_custom_call.1} parent=15 // pred_check
          %p130 = pneg %p49
        $region18: #{tpu_custom_call.1} parent=15 // pred_check_branch
          %132 = sbr.rel (%p130) target = $region20
        $region19: #{tpu_custom_call.1} parent=15 // pred_region
          %s133 = sand.u32 %s39, 1
          %s134 = scalar_lea.sflag [#allocation3], %s133
          %s135 = sand.u32 %s39, 1
          %s136 = smul.addr %s135, 4
          %s137 = scalar_lea.vmem [#allocation2], %s136
          %s139 = ssub.s32 64, 64
          %140 = vsyncadd %s134, %s139
          %s141 = smul.addr %s24, 64
          %s142 = scalar_lea.hbm %s0, %s141
          %s144 = sshll.u32 %s137, 4
          %s145 = int_to_ptr.vmem [resolvable:$true] %s144
          %147 = dma.hbm_to_vmem [thread:$0]  %s142, 64, %s145, %s134
        $region20: #{tpu_custom_call.1} parent=15 // pred_fallthru
          _
        // Predicated region
        $region21: #{tpu_custom_call.1} parent=15 // pred_check
          %p148 = pneg %p77
        $region22: #{tpu_custom_call.1} parent=15 // pred_check_branch
          %150 = sbr.rel (%p148) target = $region24
        $region23: #{tpu_custom_call.1} parent=15 // pred_region
          %s151 = sand.u32 %s67, 1
          %s152 = scalar_lea.sflag [#allocation6], %s151
          %s153 = sand.u32 %s67, 1
          %s154 = smul.addr %s153, 8
          %s155 = scalar_lea.vmem [#allocation5], %s154
          %s156 = smul.u32 2, %s25
          %s158 = ssub.s32 128, 128
          %159 = vsyncadd %s152, %s158
          %s160 = smul.addr %s24, 2
          %s161 = sadd.s32 %s156, %s160
          %s162 = smul.addr %s161, 64
          %s163 = scalar_lea.hbm %s1, %s162
          %s165 = sshll.u32 %s155, 4
          %s166 = int_to_ptr.vmem [resolvable:$true] %s165
          %168 = dma.hbm_to_vmem [thread:$0]  %s163, 128, %s166, %s152
        $region24: #{tpu_custom_call.1} parent=15 // pred_fallthru
          _
      $region16: #{tpu_custom_call.1} parent=5 // pred_fallthru
        _
      %p169 = scmp.le.s32.totalorder 1, %s17
      %p170 = scmp.lt.s32.totalorder %s17, 3
      %p171 = pnand %p169, %p170
      %p172 = pneg %p171
      // Predicated region
      $region25: #{tpu_custom_call.1} parent=5 // pred_check
        _
      $region26: #{tpu_custom_call.1} parent=5 // pred_check_branch
        %174 = sbr.rel (%p171) target = $region28
      $region27: #{tpu_custom_call.1} parent=5 // pred_region
        %s175 = ssub.s32 %s17, 1
        %s176 = sand.u32 %s42, 1
        %s177 = scalar_lea.sflag [#allocation3], %s176
        %s178 = sand.u32 %s42, 1
        %s179 = smul.addr %s178, 4
        %s180 = scalar_lea.vmem [#allocation2], %s179
        // Predicated region
        $region29: #{tpu_custom_call.1} parent=27 // pred_check
          %p181 = pneg %p55
        $region30: #{tpu_custom_call.1} parent=27 // pred_check_branch
          %183 = sbr.rel (%p181) target = $region32
        $region31: #{tpu_custom_call.1} parent=27 // pred_region
          %184 = dma.done %s177, 64
        $region32: #{tpu_custom_call.1} parent=27 // pred_fallthru
          _
        %s185 = sand.u32 %s70, 1
        %s186 = scalar_lea.sflag [#allocation6], %s185
        %s187 = sand.u32 %s70, 1
        %s188 = smul.addr %s187, 8
        %s189 = scalar_lea.vmem [#allocation5], %s188
        // Predicated region
        $region33: #{tpu_custom_call.1} parent=27 // pred_check
          %p190 = pneg %p83
        $region34: #{tpu_custom_call.1} parent=27 // pred_check_branch
          %192 = sbr.rel (%p190) target = $region36
        $region35: #{tpu_custom_call.1} parent=27 // pred_region
          %193 = dma.done %s186, 128
        $region36: #{tpu_custom_call.1} parent=27 // pred_fallthru
          _
        %s194 = sand.u32 %s42, 1
        %s195 = scalar_lea.sflag [#allocation3], %s194
        %s196 = sand.u32 %s42, 1
        %s197 = smul.addr %s196, 4
        %s198 = scalar_lea.vmem [#allocation2], %s197
        %p199 = pneg %p55
        %p200 = pneg %p52
        %s201 = sand.u32 %s70, 1
        %s202 = scalar_lea.sflag [#allocation6], %s201
        %s203 = sand.u32 %s70, 1
        %s204 = smul.addr %s203, 8
        %s205 = scalar_lea.vmem [#allocation5], %s204
        %p206 = pneg %p83
        %p207 = pneg %p80
        %p208 = pneg %p111
        %p209 = pneg %p108
        %s210 = sand.u32 %s98, 1
        %s211 = scalar_lea.sflag [#allocation4], %s210
        %s212 = sand.u32 %s98, 1
        %s213 = smul.addr %s212, 8
        %s214 = scalar_lea.vmem [#allocation7], %s213
        %s215 = smul.u32 2, %s27
        %s216 = smul.u32 2, %s27
        %v217 = vld [vmem:[%s180] sm:$0xf]
        %v218 = vld [vmem:[%s189] sm:$0xff]
        %v220 = vcombine.high %v218, %v218
        %vm221 = vcmask 31744
        %v223 = vsel %vm221, %v217, 0
        %vm225 = vcmask 1043456
        %v226 = vsel %vm225, %v218, 0
        %v228 = vsel %vm225, %v220, 0
        %230 = vmatprep.subr.mxu0 %v228
        %231 = vmatpush1.msra.mxu0 %v226
        %232 = vmatprep.subr.mxu0 0.0
        %233 = vmatpush1.msra.mxu0 0.0
        %234 = vmatprep.subr.mxu0 0.0
        %235 = vmatpush1.msra.mxu0 0.0
        %236 = vmatprep.subr.mxu0 0.0
        %237 = vmatpush1.msra.mxu0 0.0
        %238 = vmatprep.subr.mxu0 0.0
        %239 = vmatpush1.msra.mxu0 0.0
        %240 = vmatprep.subr.mxu0 0.0
        %241 = vmatpush1.msra.mxu0 0.0
        %242 = vmatprep.subr.mxu0 0.0
        %243 = vmatpush1.msra.mxu0 0.0
        %244 = vmatprep.subr.mxu0 0.0
        %245 = vmatpush1.msra.mxu0 0.0
        %246 = vmatprep.subr.mxu0 0.0
        %247 = vmatpush1.msra.mxu0 0.0
        %248 = vmatprep.subr.mxu0 0.0
        %249 = vmatpush1.msra.mxu0 0.0
        %250 = vmatprep.subr.mxu0 0.0
        %251 = vmatpush1.msra.mxu0 0.0
        %252 = vmatprep.subr.mxu0 0.0
        %253 = vmatpush1.msra.mxu0 0.0
        %254 = vmatprep.subr.mxu0 0.0
        %255 = vmatpush1.msra.mxu0 0.0
        %256 = vmatprep.subr.mxu0 0.0
        %257 = vmatpush1.msra.mxu0 0.0
        %258 = vmatprep.subr.mxu0 0.0
        %259 = vmatpush1.msra.mxu0 0.0
        %260 = vmatprep.subr.mxu0 0.0
        %261 = vmatpush1.msra.mxu0 0.0
        %262 = vmatprep.subr.mxu0 0.0
        %263 = vmatpush1.msra.mxu0 0.0
        %264 = vmatprep.subr.mxu0 0.0
        %265 = vmatpush1.msra.mxu0 0.0
        %266 = vmatprep.subr.mxu0 0.0
        %267 = vmatpush1.msra.mxu0 0.0
        %268 = vmatprep.subr.mxu0 0.0
        %269 = vmatpush1.msra.mxu0 0.0
        %270 = vmatprep.subr.mxu0 0.0
        %271 = vmatpush1.msra.mxu0 0.0
        %272 = vmatprep.subr.mxu0 0.0
        %273 = vmatpush1.msra.mxu0 0.0
        %274 = vmatprep.subr.mxu0 0.0
        %275 = vmatpush1.msra.mxu0 0.0
        %276 = vmatprep.subr.mxu0 0.0
        %277 = vmatpush1.msra.mxu0 0.0
        %278 = vmatprep.subr.mxu0 0.0
        %279 = vmatpush1.msra.mxu0 0.0
        %280 = vmatprep.subr.mxu0 0.0
        %281 = vmatpush1.msra.mxu0 0.0
        %282 = vmatprep.subr.mxu0 0.0
        %283 = vmatpush1.msra.mxu0 0.0
        %284 = vmatprep.subr.mxu0 0.0
        %285 = vmatpush1.msra.mxu0 0.0
        %286 = vmatprep.subr.mxu0 0.0
        %287 = vmatpush1.msra.mxu0 0.0
        %288 = vmatprep.subr.mxu0 0.0
        %289 = vmatpush1.msra.mxu0 0.0
        %290 = vmatprep.subr.mxu0 0.0
        %291 = vmatpush1.msra.mxu0 0.0
        %292 = vmatprep.subr.mxu0 0.0
        %293 = vmatpush1.msra.mxu0 0.0
        %294 = vmatprep.mubr.f32.mxu0 0.0
        %295 = vmatmul.mubr.f32.gmra.mrb[0].mxu0 %v223
        %v296 = vpop.f32.mrb[0].mxu0
        %v297 = vadd.f32 0.0, %v296
        %v298 = vpop.f32.mrb[0].mxu0
        %v299 = vadd.f32 0.0, %v298
        %300 = vdwg.mxu0
        %v303 = vcombine.low %v297, %v299
        %305 = vst [vmem:[%s214] sm:$0xff] %v303
        %s306 = sand.u32 %s98, 1
        %s307 = scalar_lea.sflag [#allocation4], %s306
        %s308 = sand.u32 %s98, 1
        %s309 = smul.addr %s308, 8
        %s310 = scalar_lea.vmem [#allocation7], %s309
        // Predicated region
        $region37: #{tpu_custom_call.1} parent=27 // pred_check
          %p311 = pneg %p108
        $region38: #{tpu_custom_call.1} parent=27 // pred_check_branch
          %313 = sbr.rel (%p311) target = $region40
        $region39: #{tpu_custom_call.1} parent=27 // pred_region
          %s314 = smul.u32 2, %s27
          %s316 = ssub.s32 128, 128
          %317 = vsyncadd %s307, %s316
          %s318 = smul.addr %s26, 2
          %s319 = sadd.s32 %s314, %s318
          %s320 = smul.addr %s319, 64
          %s321 = scalar_lea.hbm %s2, %s320
          %s323 = sshll.u32 %s310, 4
          %s324 = int_to_ptr.vmem [resolvable:$true] %s323
          %326 = dma.vmem_to_hbm [thread:$0]  %s324, 128, %s321, %s307
        $region40: #{tpu_custom_call.1} parent=27 // pred_fallthru
          _
      $region28: #{tpu_custom_call.1} parent=5 // pred_fallthru
        _
      %p327 = scmp.le.s32.totalorder 2, %s17
      // Predicated region
      $region41: #{tpu_custom_call.1} parent=5 // pred_check
        %p328 = pneg %p327
      $region42: #{tpu_custom_call.1} parent=5 // pred_check_branch
        %330 = sbr.rel (%p328) target = $region44
      $region43: #{tpu_custom_call.1} parent=5 // pred_region
        %s331 = ssub.s32 %s17, 2
        // Predicated region
        $region45: #{tpu_custom_call.1} parent=43 // pred_check
          %p332 = pneg %p114
        $region46: #{tpu_custom_call.1} parent=43 // pred_check_branch
          %334 = sbr.rel (%p332) target = $region48
        $region47: #{tpu_custom_call.1} parent=43 // pred_region
          %s335 = sand.u32 %s99, 1
          %s336 = scalar_lea.sflag [#allocation4], %s335
          %s337 = sand.u32 %s99, 1
          %s338 = smul.addr %s337, 8
          %s339 = scalar_lea.vmem [#allocation7], %s338
          %340 = dma.done %s336, 128
        $region48: #{tpu_custom_call.1} parent=43 // pred_fallthru
          _
      $region44: #{tpu_custom_call.1} parent=5 // pred_fallthru
        _
    $region6: #{tpu_custom_call.1} parent=1 // loop_footer
      %s21 = sadd.s32 1, %s17
    $region7: #{tpu_custom_call.1} parent=1 // loop_footer_branch
      %16 = sbr.rel target = $region3
    $region8: #{tpu_custom_call.1} parent=1 // loop_exit
      _
    %341 = vsyncpa [#allocation3], 1
    %s342 = scalar_lea.sflag [#allocation3], 1
    %343 = vsyncpa %s342, 1
    %344 = vsyncpa [#allocation6], 1
    %s345 = scalar_lea.sflag [#allocation6], 1
    %346 = vsyncpa %s345, 1
    %347 = vsyncpa [#allocation4], 1
    %s348 = scalar_lea.sflag [#allocation4], 1
    %349 = vsyncpa %s348, 1

</llo_original>
